<compile_context>
chip_gen: v7x
topology: tpu7x:2x2x1
jax: 0.10.0
libtpu: 0.0.40
codegen_flags: <defaults>
</compile_context>

<pallas_src>
import functools

import jax
import jax.numpy as jnp
from jax.experimental import pallas as pl
from jax.experimental.pallas import tpu as pltpu


def _gelu_tanh(x):
    # GELU with tanh approximation (matches torch approximate='tanh').
    c = jnp.sqrt(2.0 / jnp.pi).astype(x.dtype)
    return 0.5 * x * (1.0 + jnp.tanh(c * (x + 0.044715 * x * x * x)))


def _round_up(a, b):
    return (a + b - 1) // b * b


def _cdiv(a, b):
    return -(-a // b)


def _sublane_pack(dtype):
    # sublane packing: 16 rows for bf16, 32 for int8/fp8, 8 for f32
    return {1: 32, 2: 16, 4: 8}.get(jnp.dtype(dtype).itemsize, 8)


def _vmem_capacity_bytes():
    """Per-core VMEM capacity; conservative 64 MiB (v7x per-TC) fallback."""
    try:
        info = pltpu.get_tpu_info()
        cap = getattr(info, "vmem_capacity_bytes", None)
        if cap:
            return int(cap)
    except Exception:
        pass
    return 64 << 20


def _choose_ti(I, ti_target):
    """Pick intermediate tile: largest 128-multiple divisor of I <= ti_target,
    else pad I up to a multiple of the tile.  Returns (ti_eff, I_pad)."""
    ti_target = max(128, (ti_target // 128) * 128)
    start = min(ti_target, _round_up(I, 128))
    for d in range(start, 127, -128):
        if I % d == 0:
            return d, I
    ti_eff = min(ti_target, _round_up(I, 128))
    return ti_eff, _round_up(I, ti_eff)


def gemma_mlp_kernel(x_ref, wg_ref, bg_ref, wu_ref, bu_ref, wd_ref, bd_ref,
                     o_ref, acc_ref):
    """One (tm x H) token tile, one ti-wide slice of the intermediate dim."""
    j = pl.program_id(1)

    x = x_ref[...]  # native dtype (bf16/f32) -> fast MXU path

    # gate_proj slice: [tm, H] @ [H, ti] -> f32, bias added in f32
    g = jnp.dot(x, wg_ref[...], preferred_element_type=jnp.float32)
    g = g + bg_ref[...].astype(jnp.float32)

    # up_proj slice: [tm, H] @ [H, ti] -> f32, bias added in f32
    u = jnp.dot(x, wu_ref[...], preferred_element_type=jnp.float32)
    u = u + bu_ref[...].astype(jnp.float32)

    # gated activation in f32, cast to weight dtype only for the matmul
    h = _gelu_tanh(g) * u

    # partial down_proj: [tm, ti] @ [ti, H], accumulated in f32
    pd = jnp.dot(h.astype(wd_ref.dtype), wd_ref[...],
                 preferred_element_type=jnp.float32)

    # init accumulator with the first partial product (no zero-store + RMW)
    @pl.when(j == 0)
    def _():
        acc_ref[...] = pd

    @pl.when(j > 0)
    def _():
        acc_ref[...] += pd

    @pl.when(j == pl.num_programs(1) - 1)
    def _():
        o_ref[...] = (acc_ref[...] +
                      bd_ref[...].astype(jnp.float32)).astype(o_ref.dtype)


@functools.partial(jax.jit, static_argnames=("tm", "ti", "vmem_limit_bytes"))
def gemma_mlp(x, wg, bg, wu, bu, wd, bd, *, tm=512, ti=512,
              vmem_limit_bytes=None):
    """x: [B, S, H]; weights [in, out]; biases [1, out]."""
    B, S, H = x.shape
    Ig = wg.shape[1]          # gate output dim (== H in the module)
    I = wu.shape[1]           # intermediate size
    # Module semantics: gelu(gate) * up requires gate-out == intermediate.
    assert Ig == I, "GemmaMLP as written requires hidden == intermediate"
    # TODO(synk): a standard Gemma MLP (gate: H->I, no biases) would drop this
    # constraint; the tiling below already supports it unchanged.

    M = B * S
    x2 = x.reshape(M, H)

    pack = _sublane_pack(x.dtype)
    x_bytes = jnp.dtype(x.dtype).itemsize
    w_bytes = jnp.dtype(wd.dtype).itemsize

    # --- VMEM budget (per generation) ------------------------------------
    budget = int(_vmem_capacity_bytes() * 0.75)
    headroom = 6 << 20

    # --- intermediate tiling (divisor of I, or pad I) ---------------------
    ti_eff, I_pad = _choose_ti(I, ti)
    # shrink ti if the weight tiles alone would blow the budget (huge H)
    while (3 * H * ti_eff * w_bytes * 2 + headroom > int(budget * 0.8)
           and ti_eff > 128):
        ti_eff, I_pad = _choose_ti(I, max(128, (ti_eff // 2) // 128 * 128))

    if I_pad != I:
        dp = I_pad - I      # zero-padded columns/rows contribute 0 to the sum
        wg = jnp.pad(wg, ((0, 0), (0, dp)))
        bg = jnp.pad(bg, ((0, 0), (0, dp)))
        wu = jnp.pad(wu, ((0, 0), (0, dp)))
        bu = jnp.pad(bu, ((0, 0), (0, dp)))
        wd = jnp.pad(wd, ((0, dp), (0, 0)))

    # --- tm cap from the VMEM budget; single-buffer x/out only if tight ---
    fixed = 3 * H * ti_eff * w_bytes * 2 + (2 * ti_eff + H) * 4 * 2

    def _tm_cap(xbuf, obuf):
        per_tm = H * (x_bytes * xbuf + x_bytes * obuf + 4)  # x + out + f32 acc
        avail = budget - fixed - headroom
        if avail < per_tm * pack:
            return pack
        return max(pack, (avail // per_tm) // pack * pack)

    xbuf = obuf = 2
    tm_cap = _tm_cap(xbuf, obuf)
    if tm_cap < min(tm, _round_up(M, pack)):
        # VMEM-tight (e.g. v7x 64 MiB/TC): the x/out blocks are j-invariant,
        # double-buffering them is pure waste -> single-buffer them.
        xbuf = obuf = 1
        tm_cap = _tm_cap(xbuf, obuf)
    tm_req = max(pack, min(tm, tm_cap))

    # --- M tiling: minimize padding; >=2 tiles for v7x megacore sharding --
    nt = _cdiv(M, tm_req)
    if nt == 1 and M >= 256:
        nt = 2
    tm_eff = _round_up(_cdiv(M, nt), pack)
    M_pad = nt * tm_eff
    if M_pad != M:
        x2 = jnp.pad(x2, ((0, M_pad - M), (0, 0)))

    grid = (nt, I_pad // ti_eff)

    # --- auto vmem limit ---------------------------------------------------
    needed = fixed + tm_eff * H * (x_bytes * xbuf + x_bytes * obuf + 4)
    if vmem_limit_bytes is None:
        vmem_limit_bytes = int(min(budget, max(needed + (8 << 20), 32 << 20)))

    # --- cost hint: weights are re-streamed once per M tile ----------------
    flops = 6 * M_pad * H * I_pad
    bytes_accessed = (
        M_pad * H * x_bytes                     # x streamed once per M tile
        + M_pad * H * x_bytes                   # output written once
        + 3 * H * I_pad * w_bytes * nt          # weights re-streamed grid_i x
        + (2 * I_pad + H) * 4 * nt              # biases
    )
    cost = pl.CostEstimate(flops=flops,
                           transcendentals=M_pad * I_pad,
                           bytes_accessed=bytes_accessed)

    # --- block specs --------------------------------------------------------
    if xbuf == 1:
        x_spec = pl.BlockSpec((tm_eff, H), lambda i, j: (i, 0),
                              pipeline_mode=pl.Buffered(1))
        out_spec = pl.BlockSpec((tm_eff, H), lambda i, j: (i, 0),
                                pipeline_mode=pl.Buffered(1))
    else:
        x_spec = pl.BlockSpec((tm_eff, H), lambda i, j: (i, 0))
        out_spec = pl.BlockSpec((tm_eff, H), lambda i, j: (i, 0))

    out = pl.pallas_call(
        gemma_mlp_kernel,
        out_shape=jax.ShapeDtypeStruct((M_pad, H), x.dtype),
        grid_spec=pltpu.PrefetchScalarGridSpec(
            num_scalar_prefetch=0,
            grid=grid,
            in_specs=[
                x_spec,                                            # x tile
                pl.BlockSpec((H, ti_eff), lambda i, j: (0, j)),    # Wg slice
                pl.BlockSpec((1, ti_eff), lambda i, j: (0, j)),    # bg slice
                pl.BlockSpec((H, ti_eff), lambda i, j: (0, j)),    # Wu slice
                pl.BlockSpec((1, ti_eff), lambda i, j: (0, j)),    # bu slice
                pl.BlockSpec((ti_eff, H), lambda i, j: (j, 0)),    # Wd slice
                pl.BlockSpec((1, H), lambda i, j: (0, 0)),         # bd
            ],
            out_specs=out_spec,
            scratch_shapes=[pltpu.VMEM((tm_eff, H), jnp.float32)],
        ),
        compiler_params=pltpu.CompilerParams(
            dimension_semantics=("parallel", "arbitrary"),
            vmem_limit_bytes=vmem_limit_bytes,
        ),
        cost_estimate=cost,
    )(x2, wg, bg, wu, bu, wd, bd)

    return out[:M].reshape(B, S, H)


def gemma_mlp_ref(x, wg, bg, wu, bu, wd, bd):
    g = _gelu_tanh(x @ wg + bg[0])
    u = x @ wu + bu[0]
    return (g * u) @ wd + bd[0]


if __name__ == "__main__":
    # Small config; module as written requires hidden == intermediate.
    B, S = 2, 8
    H = 128   # hidden_size
    I = 128   # intermediate_size

    key = jax.random.PRNGKey(0)
    kx, kg, kbg, ku, kbu, kd, kbd = jax.random.split(key, 7)

    # Activations / weights in bf16 (fast MXU path), biases in f32.
    x = jax.random.normal(kx, (B, S, H), dtype=jnp.float32).astype(jnp.bfloat16)
    wg = (jax.random.normal(kg, (H, H), dtype=jnp.float32) * 0.05).astype(jnp.bfloat16)
    bg = jax.random.normal(kbg, (1, H), dtype=jnp.float32) * 0.05
    wu = (jax.random.normal(ku, (H, I), dtype=jnp.float32) * 0.05).astype(jnp.bfloat16)
    bu = jax.random.normal(kbu, (1, I), dtype=jnp.float32) * 0.05
    wd = (jax.random.normal(kd, (I, H), dtype=jnp.float32) * 0.05).astype(jnp.bfloat16)
    bd = jax.random.normal(kbd, (1, H), dtype=jnp.float32) * 0.05

    y = gemma_mlp(x, wg, bg, wu, bu, wd, bd)
    y = jax.block_until_ready(y)

    # Reference in f32 on the bf16-rounded inputs.
    y_ref = gemma_mlp_ref(x.astype(jnp.float32),
                          wg.astype(jnp.float32), bg,
                          wu.astype(jnp.float32), bu,
                          wd.astype(jnp.float32), bd)

    assert y.shape == (B, S, H)
    err = float(jnp.max(jnp.abs(y.astype(jnp.float32) - y_ref)))
    assert err < 3e-2, f"max abs err {err}"

    print("KERNEL_OK")
</pallas_src>

<mosaic_0001>
module attributes {stable_mosaic.version = 11 : i64} {
  func.func @gemma_mlp_kernel(%arg0: i32, %arg1: i32, %arg2: memref<16x128xbf16, #tpu.memory_space<vmem>>, %arg3: memref<128x128xbf16, #tpu.memory_space<vmem>>, %arg4: memref<1x128xf32, #tpu.memory_space<vmem>>, %arg5: memref<128x128xbf16, #tpu.memory_space<vmem>>, %arg6: memref<1x128xf32, #tpu.memory_space<vmem>>, %arg7: memref<128x128xbf16, #tpu.memory_space<vmem>>, %arg8: memref<1x128xf32, #tpu.memory_space<vmem>>, %arg9: memref<16x128xbf16, #tpu.memory_space<vmem>>, %arg10: memref<16x128xf32, #tpu.memory_space<vmem>>) attributes {dimension_semantics = [#tpu.dimension_semantics<parallel>, #tpu.dimension_semantics<arbitrary>], iteration_bounds = array<i64: 1, 1>, scalar_prefetch = 0 : i64, scratch_operands = 1 : i64, tpu.core_type = #tpu.core_type<tc>, window_params = [{transform_indices = @transform_0, window_bounds = array<i64: 16, 128>}, {transform_indices = @transform_1, window_bounds = array<i64: 128, 128>}, {transform_indices = @transform_2, window_bounds = array<i64: 1, 128>}, {transform_indices = @transform_3, window_bounds = array<i64: 128, 128>}, {transform_indices = @transform_4, window_bounds = array<i64: 1, 128>}, {transform_indices = @transform_5, window_bounds = array<i64: 128, 128>}, {pipeline_mode = #tpu.pipeline_mode<synchronous>, transform_indices = @transform_6, window_bounds = array<i64: 1, 128>}, {transform_indices = @transform_7, window_bounds = array<i64: 16, 128>}]} {
    %c0 = arith.constant 0 : index
    %c0_0 = arith.constant 0 : index
    %0 = vector.load %arg2[%c0, %c0_0] : memref<16x128xbf16, #tpu.memory_space<vmem>>, vector<16x128xbf16>
    %c0_1 = arith.constant 0 : index
    %c0_2 = arith.constant 0 : index
    %1 = vector.load %arg3[%c0_1, %c0_2] : memref<128x128xbf16, #tpu.memory_space<vmem>>, vector<128x128xbf16>
    %cst = arith.constant dense<0.000000e+00> : vector<16x128xf32>
    %2 = tpu.matmul %0, %1, %cst {dimension_numbers = #tpu.dot_dimension_numbers<[1], [0], [0], [1], [0, 0, 1, 1], [], []>} : vector<16x128xbf16>, vector<128x128xbf16>, vector<16x128xf32> -> vector<16x128xf32>
    %c0_3 = arith.constant 0 : index
    %c0_4 = arith.constant 0 : index
    %3 = vector.load %arg4[%c0_3, %c0_4] : memref<1x128xf32, #tpu.memory_space<vmem>>, vector<1x128xf32>
    %4 = vector.broadcast %3 : vector<1x128xf32> to vector<16x128xf32>
    %5 = arith.addf %2, %4 : vector<16x128xf32>
    %c0_5 = arith.constant 0 : index
    %c0_6 = arith.constant 0 : index
    %6 = vector.load %arg5[%c0_5, %c0_6] : memref<128x128xbf16, #tpu.memory_space<vmem>>, vector<128x128xbf16>
    %cst_7 = arith.constant dense<0.000000e+00> : vector<16x128xf32>
    %7 = tpu.matmul %0, %6, %cst_7 {dimension_numbers = #tpu.dot_dimension_numbers<[1], [0], [0], [1], [0, 0, 1, 1], [], []>} : vector<16x128xbf16>, vector<128x128xbf16>, vector<16x128xf32> -> vector<16x128xf32>
    %c0_8 = arith.constant 0 : index
    %c0_9 = arith.constant 0 : index
    %8 = vector.load %arg6[%c0_8, %c0_9] : memref<1x128xf32, #tpu.memory_space<vmem>>, vector<1x128xf32>
    %9 = vector.broadcast %8 : vector<1x128xf32> to vector<16x128xf32>
    %10 = arith.addf %7, %9 : vector<16x128xf32>
    %cst_10 = arith.constant 0.636619746 : f32
    %11 = math.sqrt %cst_10 : f32
    %cst_11 = arith.constant 5.000000e-01 : f32
    %12 = vector.broadcast %cst_11 : f32 to vector<16x128xf32>
    %13 = arith.mulf %12, %5 : vector<16x128xf32>
    %cst_12 = arith.constant 4.471500e-02 : f32
    %14 = vector.broadcast %cst_12 : f32 to vector<16x128xf32>
    %15 = arith.mulf %14, %5 : vector<16x128xf32>
    %16 = arith.mulf %15, %5 : vector<16x128xf32>
    %17 = arith.mulf %16, %5 : vector<16x128xf32>
    %18 = arith.addf %5, %17 : vector<16x128xf32>
    %19 = vector.broadcast %11 : f32 to vector<16x128xf32>
    %20 = arith.mulf %19, %18 : vector<16x128xf32>
    %21 = math.tanh %20 : vector<16x128xf32>
    %cst_13 = arith.constant 1.000000e+00 : f32
    %22 = vector.broadcast %cst_13 : f32 to vector<16x128xf32>
    %23 = arith.addf %22, %21 : vector<16x128xf32>
    %24 = arith.mulf %13, %23 : vector<16x128xf32>
    %25 = arith.mulf %24, %10 : vector<16x128xf32>
    %26 = arith.truncf %25 : vector<16x128xf32> to vector<16x128xbf16>
    %c0_14 = arith.constant 0 : index
    %c0_15 = arith.constant 0 : index
    %27 = vector.load %arg7[%c0_14, %c0_15] : memref<128x128xbf16, #tpu.memory_space<vmem>>, vector<128x128xbf16>
    %cst_16 = arith.constant dense<0.000000e+00> : vector<16x128xf32>
    %28 = tpu.matmul %26, %27, %cst_16 {dimension_numbers = #tpu.dot_dimension_numbers<[1], [0], [0], [1], [0, 0, 1, 1], [], []>} : vector<16x128xbf16>, vector<128x128xbf16>, vector<16x128xf32> -> vector<16x128xf32>
    %c0_i32 = arith.constant 0 : i32
    %29 = arith.cmpi eq, %arg1, %c0_i32 : i32
    %30 = arith.extui %29 : i1 to i32
    %c0_i32_17 = arith.constant 0 : i32
    %31 = arith.cmpi ne, %30, %c0_i32_17 : i32
    scf.if %31 {
      %c0_22 = arith.constant 0 : index
      %c0_23 = arith.constant 0 : index
      %38 = vector.load %arg10[%c0_22, %c0_23] : memref<16x128xf32, #tpu.memory_space<vmem>>, vector<16x128xf32>
      tpu.vector_store %arg10[%c0_22, %c0_23], %28 {strides = array<i32>} : memref<16x128xf32, #tpu.memory_space<vmem>>, vector<16x128xf32>,
    } else {
    }
    %c0_i32_18 = arith.constant 0 : i32
    %32 = arith.cmpi sgt, %arg1, %c0_i32_18 : i32
    %33 = arith.extui %32 : i1 to i32
    %c0_i32_19 = arith.constant 0 : i32
    %34 = arith.cmpi ne, %33, %c0_i32_19 : i32
    scf.if %34 {
      %c0_22 = arith.constant 0 : index
      %c0_23 = arith.constant 0 : index
      %38 = vector.load %arg10[%c0_22, %c0_23] : memref<16x128xf32, #tpu.memory_space<vmem>>, vector<16x128xf32>
      %39 = arith.addf %38, %28 : vector<16x128xf32>
      %c0_24 = arith.constant 0 : index
      %c0_25 = arith.constant 0 : index
      %40 = vector.load %arg10[%c0_24, %c0_25] : memref<16x128xf32, #tpu.memory_space<vmem>>, vector<16x128xf32>
      tpu.vector_store %arg10[%c0_24, %c0_25], %39 {strides = array<i32>} : memref<16x128xf32, #tpu.memory_space<vmem>>, vector<16x128xf32>,
    } else {
    }
    %c0_i32_20 = arith.constant 0 : i32
    %35 = arith.cmpi eq, %arg1, %c0_i32_20 : i32
    %36 = arith.extui %35 : i1 to i32
    %c0_i32_21 = arith.constant 0 : i32
    %37 = arith.cmpi ne, %36, %c0_i32_21 : i32
    scf.if %37 {
      %c0_22 = arith.constant 0 : index
      %c0_23 = arith.constant 0 : index
      %38 = vector.load %arg10[%c0_22, %c0_23] : memref<16x128xf32, #tpu.memory_space<vmem>>, vector<16x128xf32>
      %c0_24 = arith.constant 0 : index
      %c0_25 = arith.constant 0 : index
      %39 = vector.load %arg8[%c0_24, %c0_25] : memref<1x128xf32, #tpu.memory_space<vmem>>, vector<1x128xf32>
      %40 = vector.broadcast %39 : vector<1x128xf32> to vector<16x128xf32>
      %41 = arith.addf %38, %40 : vector<16x128xf32>
      %42 = arith.truncf %41 : vector<16x128xf32> to vector<16x128xbf16>
      %c0_26 = arith.constant 0 : index
      %c0_27 = arith.constant 0 : index
      %43 = vector.load %arg9[%c0_26, %c0_27] : memref<16x128xbf16, #tpu.memory_space<vmem>>, vector<16x128xbf16>
      tpu.vector_store %arg9[%c0_26, %c0_27], %42 {strides = array<i32>} : memref<16x128xbf16, #tpu.memory_space<vmem>>, vector<16x128xbf16>,
    } else {
    }
    return
  }
  func.func @transform_0(%arg0: i32, %arg1: i32) -> (i32, i32) {
    %c0_i32 = arith.constant 0 : i32
    %c0_i32_0 = arith.constant 0 : i32
    return %arg0, %c0_i32 : i32, i32
  }
  func.func @transform_1(%arg0: i32, %arg1: i32) -> (i32, i32) {
    %c0_i32 = arith.constant 0 : i32
    %c0_i32_0 = arith.constant 0 : i32
    return %c0_i32, %arg1 : i32, i32
  }
  func.func @transform_2(%arg0: i32, %arg1: i32) -> (i32, i32) {
    %c0_i32 = arith.constant 0 : i32
    %c0_i32_0 = arith.constant 0 : i32
    return %c0_i32, %arg1 : i32, i32
  }
  func.func @transform_3(%arg0: i32, %arg1: i32) -> (i32, i32) {
    %c0_i32 = arith.constant 0 : i32
    %c0_i32_0 = arith.constant 0 : i32
    return %c0_i32, %arg1 : i32, i32
  }
  func.func @transform_4(%arg0: i32, %arg1: i32) -> (i32, i32) {
    %c0_i32 = arith.constant 0 : i32
    %c0_i32_0 = arith.constant 0 : i32
    return %c0_i32, %arg1 : i32, i32
  }
  func.func @transform_5(%arg0: i32, %arg1: i32) -> (i32, i32) {
    %c0_i32 = arith.constant 0 : i32
    %c0_i32_0 = arith.constant 0 : i32
    return %arg1, %c0_i32 : i32, i32
  }
  func.func @transform_6(%arg0: i32, %arg1: i32) -> (i32, i32) {
    %c0_i32 = arith.constant 0 : i32
    %c0_i32_0 = arith.constant 0 : i32
    %c0_i32_1 = arith.constant 0 : i32
    return %c0_i32, %c0_i32_0 : i32, i32
  }
  func.func @transform_7(%arg0: i32, %arg1: i32) -> (i32, i32) {
    %c0_i32 = arith.constant 0 : i32
    %c0_i32_0 = arith.constant 0 : i32
    return %arg0, %c0_i32 : i32, i32
  }
}

</mosaic_0001>

<llo_original>
// kernel: gemma_mlp.1
$region0: #{gemma_mlp.1}
  #allocation0 [shape = 'u32[]', space=smem, size = 0x4, offset = 0x4, fixed_abs, tag = 'smem constant byte address 0x4 - core index']
  #allocation1 [shape = 'u32[144,128]{1,0:T(1,128)}', space=vmem, size = 0x12000, scoped, tag = 'internal scratch']
  #allocation2 [shape = 'f32[16,128]{1,0:T(8,128)}', space=vmem, size = 0x2000, scoped, tag = 'scratch operand']
  %s0 = inlined_call_operand.hbm [shape: bf16[16,128], index: 0, kind: input, shape index: {}]
  %s1 = inlined_call_operand.hbm [shape: bf16[128,128], index: 1, kind: input, shape index: {}]
  %s2 = inlined_call_operand.vmem [shape: f32[1,128], index: 2, kind: input, shape index: {}]
  %s3 = inlined_call_operand.hbm [shape: bf16[128,128], index: 3, kind: input, shape index: {}]
  %s4 = inlined_call_operand.vmem [shape: f32[1,128], index: 4, kind: input, shape index: {}]
  %s5 = inlined_call_operand.hbm [shape: bf16[128,128], index: 5, kind: input, shape index: {}]
  %s6 = inlined_call_operand.vmem [shape: f32[1,128], index: 6, kind: input, shape index: {}]
  %s7 = inlined_call_operand.hbm [shape: bf16[16,128], index: 7, kind: output, shape index: {}]
  %s8 = sld [smem:[#allocation0]]
  $region66: #{gemma_mlp.1} parent=0
    _
  %s10 = ssub.s32 1, %s8
  %s11 = scalar_select 0, %s10, %s8
  $region1: #{gemma_mlp.1} parent=0
    #allocation3 [shape = 'u8[4096]{0}', space=vmem, size = 0x1000, scoped, tag = 'input window, operand 0, single buffered']
    #allocation4 [shape = 's32[1]{0}', space=sflag, size = 0x4, scoped, tag = 'scoped memory for gemma_mlp.1']
    #allocation5 [shape = 's32[1]{0}', space=sflag, size = 0x4, scoped, tag = 'scoped memory for gemma_mlp.1']
    #allocation6 [shape = 'u8[32768]{0}', space=vmem, size = 0x8000, scoped, tag = 'input window, operand 1, single buffered']
    #allocation7 [shape = 's32[1]{0}', space=sflag, size = 0x4, scoped, tag = 'scoped memory for gemma_mlp.1']
    #allocation8 [shape = 'u8[32768]{0}', space=vmem, size = 0x8000, scoped, tag = 'input window, operand 3, single buffered']
    #allocation9 [shape = 'u8[32768]{0}', space=vmem, size = 0x8000, scoped, tag = 'input window, operand 5, single buffered']
    #allocation10 [shape = 's32[1]{0}', space=sflag, size = 0x4, scoped, tag = 'scoped memory for gemma_mlp.1']
    #allocation11 [shape = 'u8[4096]{0}', space=vmem, size = 0x1000, scoped, tag = 'output window, operand 0, single buffered']
    %12 = vsyncpa [#allocation4], 0
    %13 = vsyncpa [#allocation7], 0
    %14 = vsyncpa [#allocation10], 0
    %15 = vsyncpa [#allocation5], 0
    // Predicated region
    $region2: #{gemma_mlp.1} parent=1 // pred_check
      _
    $region3: #{gemma_mlp.1} parent=1 // pred_check_branch
      %17 = sbr.rel (0) target = $region5
    $region4: #{gemma_mlp.1} parent=1 // pred_region
      %s19 = ssub.s32 128, 128
      %20 = vsyncadd [#allocation4], %s19
      %s21 = sshll.u32 [#allocation3], 4
      %s22 = int_to_ptr.vmem [resolvable:$true] %s21
      %27 = dma.hbm_to_vmem [thread:$0]  %s0, 128, %s22, [#allocation4], 64, 64, 4
    $region5: #{gemma_mlp.1} parent=1 // pred_fallthru
      _
    // Predicated region
    $region6: #{gemma_mlp.1} parent=1 // pred_check
      _
    $region7: #{gemma_mlp.1} parent=1 // pred_check_branch
      %29 = sbr.rel (0) target = $region9
    $region8: #{gemma_mlp.1} parent=1 // pred_region
      %s31 = ssub.s32 1024, 1024
      %32 = vsyncadd [#allocation7], %s31
      %s33 = sshll.u32 [#allocation6], 4
      %s34 = int_to_ptr.vmem [resolvable:$true] %s33
      %39 = dma.hbm_to_vmem [thread:$0]  %s1, 1024, %s34, [#allocation7], 64, 64, 4
    $region9: #{gemma_mlp.1} parent=1 // pred_fallthru
      _
    // Predicated region
    $region10: #{gemma_mlp.1} parent=1 // pred_check
      _
    $region11: #{gemma_mlp.1} parent=1 // pred_check_branch
      %41 = sbr.rel (0) target = $region13
    $region12: #{gemma_mlp.1} parent=1 // pred_region
      _
    $region13: #{gemma_mlp.1} parent=1 // pred_fallthru
      _
    // Predicated region
    $region14: #{gemma_mlp.1} parent=1 // pred_check
      _
    $region15: #{gemma_mlp.1} parent=1 // pred_check_branch
      %43 = sbr.rel (0) target = $region17
    $region16: #{gemma_mlp.1} parent=1 // pred_region
      %s45 = ssub.s32 1024, 1024
      %46 = vsyncadd [#allocation7], %s45
      %s47 = sshll.u32 [#allocation8], 4
      %s48 = int_to_ptr.vmem [resolvable:$true] %s47
      %53 = dma.hbm_to_vmem [thread:$0]  %s3, 1024, %s48, [#allocation7], 64, 64, 4
    $region17: #{gemma_mlp.1} parent=1 // pred_fallthru
      _
    // Predicated region
    $region18: #{gemma_mlp.1} parent=1 // pred_check
      _
    $region19: #{gemma_mlp.1} parent=1 // pred_check_branch
      %55 = sbr.rel (0) target = $region21
    $region20: #{gemma_mlp.1} parent=1 // pred_region
      _
    $region21: #{gemma_mlp.1} parent=1 // pred_fallthru
      _
    // Predicated region
    $region22: #{gemma_mlp.1} parent=1 // pred_check
      _
    $region23: #{gemma_mlp.1} parent=1 // pred_check_branch
      %57 = sbr.rel (0) target = $region25
    $region24: #{gemma_mlp.1} parent=1 // pred_region
      %s59 = ssub.s32 1024, 1024
      %60 = vsyncadd [#allocation10], %s59
      %s61 = sshll.u32 [#allocation9], 4
      %s62 = int_to_ptr.vmem [resolvable:$true] %s61
      %67 = dma.hbm_to_vmem [thread:$0]  %s5, 1024, %s62, [#allocation10], 64, 64, 4
    $region25: #{gemma_mlp.1} parent=1 // pred_fallthru
      _
    // Predicated region
    $region26: #{gemma_mlp.1} parent=1 // pred_check
      _
    $region27: #{gemma_mlp.1} parent=1 // pred_check_branch
      %69 = sbr.rel (0) target = $region29
    $region28: #{gemma_mlp.1} parent=1 // pred_region
      _
    $region29: #{gemma_mlp.1} parent=1 // pred_fallthru
      _
    // Predicated region
    $region30: #{gemma_mlp.1} parent=1 // pred_check
      _
    $region31: #{gemma_mlp.1} parent=1 // pred_check_branch
      %71 = sbr.rel (0) target = $region33
    $region32: #{gemma_mlp.1} parent=1 // pred_region
      %72 = dma.done [#allocation4], 128
    $region33: #{gemma_mlp.1} parent=1 // pred_fallthru
      _
    // Predicated region
    $region34: #{gemma_mlp.1} parent=1 // pred_check
      _
    $region35: #{gemma_mlp.1} parent=1 // pred_check_branch
      %74 = sbr.rel (0) target = $region37
    $region36: #{gemma_mlp.1} parent=1 // pred_region
      %75 = dma.done [#allocation7], 1024
    $region37: #{gemma_mlp.1} parent=1 // pred_fallthru
      _
    // Predicated region
    $region38: #{gemma_mlp.1} parent=1 // pred_check
      _
    $region39: #{gemma_mlp.1} parent=1 // pred_check_branch
      %77 = sbr.rel (0) target = $region41
    $region40: #{gemma_mlp.1} parent=1 // pred_region
      %78 = dma.done [#allocation7], 1024
    $region41: #{gemma_mlp.1} parent=1 // pred_fallthru
      _
    // Predicated region
    $region42: #{gemma_mlp.1} parent=1 // pred_check
      _
    $region43: #{gemma_mlp.1} parent=1 // pred_check_branch
      %80 = sbr.rel (0) target = $region45
    $region44: #{gemma_mlp.1} parent=1 // pred_region
      %81 = dma.done [#allocation10], 1024
    $region45: #{gemma_mlp.1} parent=1 // pred_fallthru
      _
    %v83 = vld [vmem:[#allocation3] sm:$0xf]
    %v84 = vld [vmem:[#allocation3 + $0x4] sm:$0xf]
    %v85 = vld [vmem:[#allocation6] sm:$0xf]
    %v86 = vld [vmem:[#allocation6 + $0x4] sm:$0xf]
    %v87 = vld [vmem:[#allocation6 + $0x8] sm:$0xf]
    %v88 = vld [vmem:[#allocation6 + $0xc] sm:$0xf]
    %v89 = vld [vmem:[#allocation6 + $0x10] sm:$0xf]
    %v90 = vld [vmem:[#allocation6 + $0x14] sm:$0xf]
    %v91 = vld [vmem:[#allocation6 + $0x18] sm:$0xf]
    %v92 = vld [vmem:[#allocation6 + $0x1c] sm:$0xf]
    %v93 = vld [vmem:[#allocation6 + $0x20] sm:$0xf]
    %v94 = vld [vmem:[#allocation6 + $0x24] sm:$0xf]
    %v95 = vld [vmem:[#allocation6 + $0x28] sm:$0xf]
    %v96 = vld [vmem:[#allocation6 + $0x2c] sm:$0xf]
    %v97 = vld [vmem:[#allocation6 + $0x30] sm:$0xf]
    %v98 = vld [vmem:[#allocation6 + $0x34] sm:$0xf]
    %v99 = vld [vmem:[#allocation6 + $0x38] sm:$0xf]
    %v100 = vld [vmem:[#allocation6 + $0x3c] sm:$0xf]
    %v101 = vld [vmem:[%s2] sm:$0x1]
    %v103 = vlaneseq
    %v104 = vshrl.u32 %v103, 7
    %v105 = vsub.s32 0, %v104
    %v106 = vrot.slane %v101, %v105
    %v110 = vunpack.c.l.b16 %v83
    %v111 = vunpack.c.l.b16 %v84
    %v112 = vpack.c.b16 %v111, %v110
    %v130 = vunpack.c.l.b16 %v85
    %v131 = vunpack.c.l.b16 %v86
    %v132 = vunpack.c.l.b16 %v87
    %v133 = vunpack.c.l.b16 %v88
    %v134 = vunpack.c.l.b16 %v89
    %v135 = vunpack.c.l.b16 %v90
    %v136 = vunpack.c.l.b16 %v91
    %v137 = vunpack.c.l.b16 %v92
    %v138 = vunpack.c.l.b16 %v93
    %v139 = vunpack.c.l.b16 %v94
    %v140 = vunpack.c.l.b16 %v95
    %v141 = vunpack.c.l.b16 %v96
    %v142 = vunpack.c.l.b16 %v97
    %v143 = vunpack.c.l.b16 %v98
    %v144 = vunpack.c.l.b16 %v99
    %v145 = vunpack.c.l.b16 %v100
    %v146 = vpack.c.b16 %v131, %v130
    %v147 = vpack.c.b16 %v133, %v132
    %v148 = vpack.c.b16 %v135, %v134
    %v149 = vpack.c.b16 %v137, %v136
    %v150 = vpack.c.b16 %v139, %v138
    %v151 = vpack.c.b16 %v141, %v140
    %v152 = vpack.c.b16 %v143, %v142
    %v153 = vpack.c.b16 %v145, %v144
    %162 = vmatprep.subr.bf16.mxu0 0
    %163 = vmatpush1.bf16.msra.mxu0 %v146
    %164 = vmatprep.subr.bf16.mxu0 0
    %165 = vmatpush1.bf16.msra.mxu0 %v147
    %166 = vmatprep.subr.bf16.mxu0 0
    %167 = vmatpush1.bf16.msra.mxu0 %v148
    %168 = vmatprep.subr.bf16.mxu0 0
    %169 = vmatpush1.bf16.msra.mxu0 %v149
    %170 = vmatprep.subr.bf16.mxu0 0
    %171 = vmatpush1.bf16.msra.mxu0 %v150
    %172 = vmatprep.subr.bf16.mxu0 0
    %173 = vmatpush1.bf16.msra.mxu0 %v151
    %174 = vmatprep.subr.bf16.mxu0 0
    %175 = vmatpush1.bf16.msra.mxu0 %v152
    %176 = vmatprep.subr.bf16.mxu0 0
    %177 = vmatpush1.bf16.msra.mxu0 %v153
    %178 = vmatprep.subr.bf16.mxu0 0
    %179 = vmatpush1.bf16.msra.mxu0 0
    %180 = vmatprep.subr.bf16.mxu0 0
    %181 = vmatpush1.bf16.msra.mxu0 0
    %182 = vmatprep.subr.bf16.mxu0 0
    %183 = vmatpush1.bf16.msra.mxu0 0
    %184 = vmatprep.subr.bf16.mxu0 0
    %185 = vmatpush1.bf16.msra.mxu0 0
    %186 = vmatprep.subr.bf16.mxu0 0
    %187 = vmatpush1.bf16.msra.mxu0 0
    %188 = vmatprep.subr.bf16.mxu0 0
    %189 = vmatpush1.bf16.msra.mxu0 0
    %190 = vmatprep.subr.bf16.mxu0 0
    %191 = vmatpush1.bf16.msra.mxu0 0
    %192 = vmatprep.subr.bf16.mxu0 0
    %193 = vmatpush1.bf16.msra.mxu0 0
    %194 = vmatprep.mubr.bf16.mxu0 0
    %195 = vmatmul.mubr.bf16.gmra.mrb[0].mxu0 %v112
    %v196 = vpop.f32.mrb[0].mxu0
    %v197 = vadd.f32 %v106, %v196
    %v198 = vpop.f32.mrb[0].mxu0
    %v199 = vpop.f32.mrb[0].mxu0
    %v200 = vadd.f32 %v106, %v199
    %v201 = vpop.f32.mrb[0].mxu0
    %202 = vdwg.mxu0
    %v203 = vld [vmem:[#allocation8] sm:$0xf]
    %v204 = vld [vmem:[#allocation8 + $0x4] sm:$0xf]
    %v205 = vld [vmem:[#allocation8 + $0x8] sm:$0xf]
    %v206 = vld [vmem:[#allocation8 + $0xc] sm:$0xf]
    %v207 = vld [vmem:[#allocation8 + $0x10] sm:$0xf]
    %v208 = vld [vmem:[#allocation8 + $0x14] sm:$0xf]
    %v209 = vld [vmem:[#allocation8 + $0x18] sm:$0xf]
    %v210 = vld [vmem:[#allocation8 + $0x1c] sm:$0xf]
    %v211 = vld [vmem:[#allocation8 + $0x20] sm:$0xf]
    %v212 = vld [vmem:[#allocation8 + $0x24] sm:$0xf]
    %v213 = vld [vmem:[#allocation8 + $0x28] sm:$0xf]
    %v214 = vld [vmem:[#allocation8 + $0x2c] sm:$0xf]
    %v215 = vld [vmem:[#allocation8 + $0x30] sm:$0xf]
    %v216 = vld [vmem:[#allocation8 + $0x34] sm:$0xf]
    %v217 = vld [vmem:[#allocation8 + $0x38] sm:$0xf]
    %v218 = vld [vmem:[#allocation8 + $0x3c] sm:$0xf]
    %v219 = vld [vmem:[%s4] sm:$0x1]
    %v221 = vlaneseq
    %v222 = vshrl.u32 %v221, 7
    %v223 = vsub.s32 0, %v222
    %v224 = vrot.slane %v219, %v223
    %v242 = vunpack.c.l.b16 %v203
    %v243 = vunpack.c.l.b16 %v204
    %v244 = vunpack.c.l.b16 %v205
    %v245 = vunpack.c.l.b16 %v206
    %v246 = vunpack.c.l.b16 %v207
    %v247 = vunpack.c.l.b16 %v208
    %v248 = vunpack.c.l.b16 %v209
    %v249 = vunpack.c.l.b16 %v210
    %v250 = vunpack.c.l.b16 %v211
    %v251 = vunpack.c.l.b16 %v212
    %v252 = vunpack.c.l.b16 %v213
    %v253 = vunpack.c.l.b16 %v214
    %v254 = vunpack.c.l.b16 %v215
    %v255 = vunpack.c.l.b16 %v216
    %v256 = vunpack.c.l.b16 %v217
    %v257 = vunpack.c.l.b16 %v218
    %v258 = vpack.c.b16 %v243, %v242
    %v259 = vpack.c.b16 %v245, %v244
    %v260 = vpack.c.b16 %v247, %v246
    %v261 = vpack.c.b16 %v249, %v248
    %v262 = vpack.c.b16 %v251, %v250
    %v263 = vpack.c.b16 %v253, %v252
    %v264 = vpack.c.b16 %v255, %v254
    %v265 = vpack.c.b16 %v257, %v256
    %274 = vmatprep.subr.bf16.mxu0 0
    %275 = vmatpush1.bf16.msra.mxu0 %v258
    %276 = vmatprep.subr.bf16.mxu0 0
    %277 = vmatpush1.bf16.msra.mxu0 %v259
    %278 = vmatprep.subr.bf16.mxu0 0
    %279 = vmatpush1.bf16.msra.mxu0 %v260
    %280 = vmatprep.subr.bf16.mxu0 0
    %281 = vmatpush1.bf16.msra.mxu0 %v261
    %282 = vmatprep.subr.bf16.mxu0 0
    %283 = vmatpush1.bf16.msra.mxu0 %v262
    %284 = vmatprep.subr.bf16.mxu0 0
    %285 = vmatpush1.bf16.msra.mxu0 %v263
    %286 = vmatprep.subr.bf16.mxu0 0
    %287 = vmatpush1.bf16.msra.mxu0 %v264
    %288 = vmatprep.subr.bf16.mxu0 0
    %289 = vmatpush1.bf16.msra.mxu0 %v265
    %290 = vmatprep.subr.bf16.mxu0 0
    %291 = vmatpush1.bf16.msra.mxu0 0
    %292 = vmatprep.subr.bf16.mxu0 0
    %293 = vmatpush1.bf16.msra.mxu0 0
    %294 = vmatprep.subr.bf16.mxu0 0
    %295 = vmatpush1.bf16.msra.mxu0 0
    %296 = vmatprep.subr.bf16.mxu0 0
    %297 = vmatpush1.bf16.msra.mxu0 0
    %298 = vmatprep.subr.bf16.mxu0 0
    %299 = vmatpush1.bf16.msra.mxu0 0
    %300 = vmatprep.subr.bf16.mxu0 0
    %301 = vmatpush1.bf16.msra.mxu0 0
    %302 = vmatprep.subr.bf16.mxu0 0
    %303 = vmatpush1.bf16.msra.mxu0 0
    %304 = vmatprep.subr.bf16.mxu0 0
    %305 = vmatpush1.bf16.msra.mxu0 0
    %306 = vmatprep.mubr.bf16.mxu0 0
    %307 = vmatmul.mubr.bf16.gmra.mrb[0].mxu0 %v112
    %v308 = vpop.f32.mrb[0].mxu0
    %v309 = vadd.f32 %v224, %v308
    %v310 = vpop.f32.mrb[0].mxu0
    %v311 = vpop.f32.mrb[0].mxu0
    %v312 = vadd.f32 %v224, %v311
    %v313 = vpop.f32.mrb[0].mxu0
    %314 = vdwg.mxu0
    %v315 = vmul.f32 %v197, 0.5
    %v316 = vmul.f32 %v200, 0.5
    %v317 = vmul.f32 %v197, 0.044715
    %v318 = vmul.f32 %v200, 0.044715
    %v319 = vmul.f32 %v317, %v197
    %v320 = vmul.f32 %v318, %v200
    %v321 = vmul.f32 %v319, %v197
    %v322 = vmul.f32 %v320, %v200
    %v323 = vadd.f32 %v197, %v321
    %v324 = vadd.f32 %v200, %v322
    %v325 = vmul.f32 %v323, 0.7978845
    %v326 = vmul.f32 %v324, 0.7978845
    %v327 = vtanh.pop %v325
    %v328 = vtanh.pop %v326
    %v329 = vadd.f32 %v327, 1.0
    %v330 = vadd.f32 %v328, 1.0
    %v331 = vmul.f32 %v315, %v329
    %v332 = vmul.f32 %v316, %v330
    %v333 = vmul.f32 %v331, %v309
    %v334 = vmul.f32 %v332, %v312
    %v335 = vpack.c.bf16 %v334, %v333
    %v336 = vld [vmem:[#allocation9] sm:$0xf]
    %v337 = vld [vmem:[#allocation9 + $0x4] sm:$0xf]
    %v338 = vld [vmem:[#allocation9 + $0x8] sm:$0xf]
    %v339 = vld [vmem:[#allocation9 + $0xc] sm:$0xf]
    %v340 = vld [vmem:[#allocation9 + $0x10] sm:$0xf]
    %v341 = vld [vmem:[#allocation9 + $0x14] sm:$0xf]
    %v342 = vld [vmem:[#allocation9 + $0x18] sm:$0xf]
    %v343 = vld [vmem:[#allocation9 + $0x1c] sm:$0xf]
    %v344 = vld [vmem:[#allocation9 + $0x20] sm:$0xf]
    %v345 = vld [vmem:[#allocation9 + $0x24] sm:$0xf]
    %v346 = vld [vmem:[#allocation9 + $0x28] sm:$0xf]
    %v347 = vld [vmem:[#allocation9 + $0x2c] sm:$0xf]
    %v348 = vld [vmem:[#allocation9 + $0x30] sm:$0xf]
    %v349 = vld [vmem:[#allocation9 + $0x34] sm:$0xf]
    %v350 = vld [vmem:[#allocation9 + $0x38] sm:$0xf]
    %v351 = vld [vmem:[#allocation9 + $0x3c] sm:$0xf]
    %v368 = vunpack.c.l.b16 %v336
    %v369 = vunpack.c.l.b16 %v337
    %v370 = vunpack.c.l.b16 %v338
    %v371 = vunpack.c.l.b16 %v339
    %v372 = vunpack.c.l.b16 %v340
    %v373 = vunpack.c.l.b16 %v341
    %v374 = vunpack.c.l.b16 %v342
    %v375 = vunpack.c.l.b16 %v343
    %v376 = vunpack.c.l.b16 %v344
    %v377 = vunpack.c.l.b16 %v345
    %v378 = vunpack.c.l.b16 %v346
    %v379 = vunpack.c.l.b16 %v347
    %v380 = vunpack.c.l.b16 %v348
    %v381 = vunpack.c.l.b16 %v349
    %v382 = vunpack.c.l.b16 %v350
    %v383 = vunpack.c.l.b16 %v351
    %v384 = vpack.c.b16 %v369, %v368
    %v385 = vpack.c.b16 %v371, %v370
    %v386 = vpack.c.b16 %v373, %v372
    %v387 = vpack.c.b16 %v375, %v374
    %v388 = vpack.c.b16 %v377, %v376
    %v389 = vpack.c.b16 %v379, %v378
    %v390 = vpack.c.b16 %v381, %v380
    %v391 = vpack.c.b16 %v383, %v382
    %400 = vmatprep.subr.bf16.mxu0 0
    %401 = vmatpush1.bf16.msra.mxu0 %v384
    %402 = vmatprep.subr.bf16.mxu0 0
    %403 = vmatpush1.bf16.msra.mxu0 %v385
    %404 = vmatprep.subr.bf16.mxu0 0
    %405 = vmatpush1.bf16.msra.mxu0 %v386
    %406 = vmatprep.subr.bf16.mxu0 0
    %407 = vmatpush1.bf16.msra.mxu0 %v387
    %408 = vmatprep.subr.bf16.mxu0 0
    %409 = vmatpush1.bf16.msra.mxu0 %v388
    %410 = vmatprep.subr.bf16.mxu0 0
    %411 = vmatpush1.bf16.msra.mxu0 %v389
    %412 = vmatprep.subr.bf16.mxu0 0
    %413 = vmatpush1.bf16.msra.mxu0 %v390
    %414 = vmatprep.subr.bf16.mxu0 0
    %415 = vmatpush1.bf16.msra.mxu0 %v391
    %416 = vmatprep.subr.bf16.mxu0 0
    %417 = vmatpush1.bf16.msra.mxu0 0
    %418 = vmatprep.subr.bf16.mxu0 0
    %419 = vmatpush1.bf16.msra.mxu0 0
    %420 = vmatprep.subr.bf16.mxu0 0
    %421 = vmatpush1.bf16.msra.mxu0 0
    %422 = vmatprep.subr.bf16.mxu0 0
    %423 = vmatpush1.bf16.msra.mxu0 0
    %424 = vmatprep.subr.bf16.mxu0 0
    %425 = vmatpush1.bf16.msra.mxu0 0
    %426 = vmatprep.subr.bf16.mxu0 0
    %427 = vmatpush1.bf16.msra.mxu0 0
    %428 = vmatprep.subr.bf16.mxu0 0
    %429 = vmatpush1.bf16.msra.mxu0 0
    %430 = vmatprep.subr.bf16.mxu0 0
    %431 = vmatpush1.bf16.msra.mxu0 0
    %432 = vmatprep.mubr.bf16.mxu0 0
    %433 = vmatmul.mubr.bf16.gmra.mrb[0].mxu0 %v335
    %v434 = vpop.f32.mrb[0].mxu0
    %v435 = vadd.f32 0.0, %v434
    %v436 = vpop.f32.mrb[0].mxu0
    %v437 = vpop.f32.mrb[0].mxu0
    %v438 = vadd.f32 0.0, %v437
    %v439 = vpop.f32.mrb[0].mxu0
    %440 = vdwg.mxu0
    %p441 = scmp.eq.s32.totalorder 0, 0
    // Predicated region
    $region46: #{gemma_mlp.1} parent=1 // pred_check
      %p442 = pneg %p441
    $region47: #{gemma_mlp.1} parent=1 // pred_check_branch
      %444 = sbr.rel (%p442) target = $region49
    $region48: #{gemma_mlp.1} parent=1 // pred_region
      %445 = vst [vmem:[#allocation2] sm:$0xff] %v435
      %446 = vst [vmem:[#allocation2 + $0x8] sm:$0xff] %v438
    $region49: #{gemma_mlp.1} parent=1 // pred_fallthru
      _
    %p447 = scmp.gt.s32.totalorder 0, 0
    // Predicated region
    $region50: #{gemma_mlp.1} parent=1 // pred_check
      %p448 = pneg %p447
    $region51: #{gemma_mlp.1} parent=1 // pred_check_branch
      %450 = sbr.rel (%p448) target = $region53
    $region52: #{gemma_mlp.1} parent=1 // pred_region
      %v451 = vld [vmem:[#allocation2] sm:$0xff]
      %v452 = vld [vmem:[#allocation2 + $0x8] sm:$0xff]
      %v453 = vadd.f32 %v451, %v435
      %v454 = vadd.f32 %v452, %v438
      %455 = vst [vmem:[#allocation2] sm:$0xff] %v453
      %456 = vst [vmem:[#allocation2 + $0x8] sm:$0xff] %v454
    $region53: #{gemma_mlp.1} parent=1 // pred_fallthru
      _
    // Predicated region
    $region54: #{gemma_mlp.1} parent=1 // pred_check
      %p457 = pneg %p441
    $region55: #{gemma_mlp.1} parent=1 // pred_check_branch
      %459 = sbr.rel (%p457) target = $region57
    $region56: #{gemma_mlp.1} parent=1 // pred_region
      %v460 = vld [vmem:[#allocation2] sm:$0xff]
      %v461 = vld [vmem:[#allocation2 + $0x8] sm:$0xff]
      %v462 = vld [vmem:[%s6] sm:$0x1]
      %v464 = vlaneseq
      %v465 = vshrl.u32 %v464, 7
      %v466 = vsub.s32 0, %v465
      %v467 = vrot.slane %v462, %v466
      %v469 = vadd.f32 %v460, %v467
      %v470 = vadd.f32 %v461, %v467
      %v471 = vpack.c.bf16 %v470, %v469
      %v473 = vunpack.c.l.b16 %v471
      %v474 = vunpack.c.h.b16 %v471
      %v475 = vpack.c.b16 %v473, %v473
      %v476 = vpack.c.b16 %v474, %v474
      %479 = vst [vmem:[#allocation11] sm:$0xf] %v475
      %480 = vst [vmem:[#allocation11 + $0x4] sm:$0xf] %v476
    $region57: #{gemma_mlp.1} parent=1 // pred_fallthru
      _
    // Predicated region
    $region58: #{gemma_mlp.1} parent=1 // pred_check
      _
    $region59: #{gemma_mlp.1} parent=1 // pred_check_branch
      %482 = sbr.rel (0) target = $region61
    $region60: #{gemma_mlp.1} parent=1 // pred_region
      %s484 = ssub.s32 128, 128
      %485 = vsyncadd [#allocation5], %s484
      %s486 = sshll.u32 [#allocation11], 4
      %s487 = int_to_ptr.vmem [resolvable:$true] %s486
      %492 = dma.vmem_to_hbm [thread:$0]  %s487, 128, %s7, [#allocation5], 64, 64, 4
    $region61: #{gemma_mlp.1} parent=1 // pred_fallthru
      _
    // Predicated region
    $region62: #{gemma_mlp.1} parent=1 // pred_check
      _
    $region63: #{gemma_mlp.1} parent=1 // pred_check_branch
      %494 = sbr.rel (0) target = $region65
    $region64: #{gemma_mlp.1} parent=1 // pred_region
      %495 = dma.done [#allocation5], 128
    $region65: #{gemma_mlp.1} parent=1 // pred_fallthru
      _
    %496 = vsyncpa [#allocation4], 1
    %497 = vsyncpa [#allocation7], 1
    %498 = vsyncpa [#allocation10], 1
    %499 = vsyncpa [#allocation5], 1

</llo_original>
